<compile_context>
chip_gen: v6e
topology: v6e:2x2x1
jax: 0.10.0
libtpu: 0.0.40
codegen_flags: <defaults>
</compile_context>

<pallas_src>
import math
from functools import partial

import jax
import jax.numpy as jnp
from jax.experimental import pallas as pl
from jax.experimental.pallas import tpu as pltpu


def _round_up(x, m):
    return ((x + m - 1) // m) * m


# ----------------------------- Pallas kernel -------------------------------

def _decoder_kernel(x_ref, wconv_ref, bconv_ref, wfc_ref, bfc_ref, out_ref):
    # x_ref    : (bt, W*C)   one row per sample, lane j = t*C + c  (bf16/f32)
    # wconv_ref: (W*C, W*O)  banded Conv1d weight (same dtype as x)
    # bconv_ref: (1, W*O)    f32 conv bias, tiled over t
    # wfc_ref  : (1, W*O)    f32 fc weight, lane j = t*O + o
    # bfc_ref  : (1,)        f32 fc bias scalar, SMEM
    # out_ref  : (bt, 1)     f32 sigmoid probabilities

    # Conv1d(k=3, pad=1) + flatten: one fused MXU GEMM, f32 accumulation.
    conv = jnp.dot(x_ref[...], wconv_ref[...],
                   preferred_element_type=jnp.float32)           # (bt, W*O)
    conv = jnp.maximum(conv + bconv_ref[...], 0.0)               # bias + ReLU (f32 VPU)

    # fc(64*W -> 1): exact-f32 elementwise weight + one lane reduction.
    logits = jnp.sum(conv * wfc_ref[...], axis=1, keepdims=True)  # (bt, 1)

    out_ref[...] = jax.nn.sigmoid(logits + bfc_ref[0])


# ------------------------------ JAX wrapper --------------------------------

def cnn_silence_decoder_simple(x, w_conv, b_conv, w_fc, b_fc,
                               *, batch_tile=None, use_bf16=True):
    """Forward pass matching the PyTorch module.

    x      : (B, C, W)  float32   (NCW, like PyTorch Conv1d input)
    w_conv : (O, C, K)  Conv1d weight, K=3, padding=1
    b_conv : (O,)
    w_fc   : (1, O*W)   Linear weight
    b_fc   : (1,)
    returns: (B, 1)
    """
    B, C, W = x.shape
    O, _, K = w_conv.shape
    assert K == 3

    in_dtype = jnp.bfloat16 if use_bf16 else jnp.float32
    itemsize = 2 if use_bf16 else 4

    # --- batch tiling --------------------------------------------------------
    if batch_tile is None:
        # ~2 MiB x tile: safe for v5e's 16 MiB scoped default and v7x's 64 MiB
        # physical VMEM even with double buffering and f32 temporaries.
        bt = min(_round_up(B, 8), max(8, (2 << 20) // (W * C * itemsize)))
        if B >= 16:
            # >= 2 grid steps so a v7x megacore has work for both TensorCores.
            bt = min(bt, _round_up(pl.cdiv(B, 2), 8))
    else:
        bt = _round_up(int(batch_tile), 8)
    bt = max(8, bt)
    nb = pl.cdiv(B, bt)
    Bp = nb * bt

    # --- operand layouts -----------------------------------------------------
    # x: (B, C, W) -> (B, W*C), lane j = t*C + c.  Fuses into one pass under jit.
    x_flat = jnp.transpose(x, (0, 2, 1)).reshape(B, W * C).astype(in_dtype)
    if Bp != B:
        x_flat = jnp.pad(x_flat, ((0, Bp - B), (0, 0)))

    # Banded conv weight: W_big[t'*C + c, t*O + o] = w_conv[o, c, t'-t+1]
    # (zero when |t'-t| > 1) -- encodes Conv1d padding=1 exactly.
    w_perm = jnp.transpose(w_conv, (2, 1, 0))                    # (K, C, O)
    zeros_co = jnp.zeros((C, O), w_conv.dtype)
    rows = []
    for tp in range(W):
        row = []
        for t in range(W):
            k = tp - t + 1
            row.append(w_perm[k] if 0 <= k < K else zeros_co)
        rows.append(jnp.concatenate(row, axis=1))                # (C, W*O)
    w_big = jnp.concatenate(rows, axis=0).astype(in_dtype)       # (W*C, W*O)

    # Conv bias tiled over t; fc weight permuted from PyTorch's o*W+t flatten
    # order to our t*O+o lane order.  Both are the real (tiny) parameter data.
    b_conv_flat = jnp.tile(b_conv, W).reshape(1, W * O).astype(jnp.float32)
    w_fc_flat = w_fc.reshape(O, W).T.reshape(1, W * O).astype(jnp.float32)
    b_fc_1d = b_fc.reshape(1).astype(jnp.float32)

    # --- cost / VMEM hints ---------------------------------------------------
    flops = 2 * Bp * (W * C) * (W * O) + 3 * Bp * (W * O) + 2 * Bp
    bytes_accessed = (Bp * W * C * itemsize + (W * C) * (W * O) * itemsize
                      + 2 * W * O * 4 + 4 + Bp * 4)
    cost = pl.CostEstimate(flops=int(flops), transcendentals=int(Bp),
                           bytes_accessed=int(bytes_accessed))

    # Per-step VMEM estimate: double-buffered x tile + weight + f32 activations.
    vmem_est = (2 * bt * W * C * itemsize + 2 * (W * C) * (W * O) * itemsize
                + 2 * bt * W * O * 4 + 4 * W * O * 4 + 4 * bt)
    vmem_limit = int(min(64 << 20, max(32 << 20, 2 * vmem_est)))

    out = pl.pallas_call(
        _decoder_kernel,
        out_shape=jax.ShapeDtypeStruct((Bp, 1), jnp.float32),
        grid=(nb,),
        in_specs=[
            pl.BlockSpec((bt, W * C), lambda i: (i, 0)),         # x tile (per-step DMA)
            pl.BlockSpec((W * C, W * O), lambda i: (0, 0)),      # banded conv weight
            pl.BlockSpec((1, W * O), lambda i: (0, 0)),          # conv bias
            pl.BlockSpec((1, W * O), lambda i: (0, 0)),          # fc weight
            pl.BlockSpec(memory_space=pltpu.MemorySpace.SMEM),   # fc bias scalar
        ],
        out_specs=pl.BlockSpec((bt, 1), lambda i: (i, 0)),
        compiler_params=pltpu.CompilerParams(
            dimension_semantics=("parallel",),   # batch tiles split across TCs
            vmem_limit_bytes=vmem_limit),
        cost_estimate=cost,
    )(x_flat, w_big, b_conv_flat, w_fc_flat, b_fc_1d)

    return out[:B]


# ------------------------- pure-JAX reference -------------------------------

def reference_forward(x, w_conv, b_conv, w_fc, b_fc):
    B, C, W = x.shape
    O, _, K = w_conv.shape
    x_pad = jnp.pad(x, ((0, 0), (0, 0), (1, 1)))
    cols = jnp.stack([x_pad[:, :, k:k + W] for k in range(K)], axis=-1)  # (B,C,W,K)
    conv = jnp.einsum('ock,bcwk->bow', w_conv, cols,
                      precision=jax.lax.Precision.HIGHEST) + b_conv[None, :, None]
    conv = jnp.maximum(conv, 0.0)
    flat = conv.reshape(B, O * W)
    logits = jnp.dot(flat, w_fc.T, precision=jax.lax.Precision.HIGHEST) + b_fc
    return jax.nn.sigmoid(logits)


# --------------------------------- main -------------------------------------

if __name__ == "__main__":
    # Small shapes consistent with the module (n_channels=32 instead of 256).
    B, C, W, O, K = 16, 32, 5, 64, 3

    key = jax.random.PRNGKey(0)
    k_x, k_wc, k_bc, k_wf, k_bf = jax.random.split(key, 5)

    x = jax.random.normal(k_x, (B, C, W), dtype=jnp.float32)

    # Deterministic parameter init (PyTorch-style uniform bounds).
    conv_bound = 1.0 / math.sqrt(C * K)
    fc_bound = 1.0 / math.sqrt(O * W)
    w_conv = jax.random.uniform(k_wc, (O, C, K), jnp.float32, -conv_bound, conv_bound)
    b_conv = jax.random.uniform(k_bc, (O,), jnp.float32, -conv_bound, conv_bound)
    w_fc = jax.random.uniform(k_wf, (1, O * W), jnp.float32, -fc_bound, fc_bound)
    b_fc = jax.random.uniform(k_bf, (1,), jnp.float32, -fc_bound, fc_bound)

    ref = jax.block_until_ready(reference_forward(x, w_conv, b_conv, w_fc, b_fc))

    # 1) f32 end-to-end, default tiling (bt=8 -> 2 "parallel" grid steps).
    fwd_f32 = jax.jit(partial(cnn_silence_decoder_simple, use_bf16=False))
    out_f32 = jax.block_until_ready(fwd_f32(x, w_conv, b_conv, w_fc, b_fc))
    assert out_f32.shape == (B, 1)
    assert jnp.allclose(out_f32, ref, rtol=2e-4, atol=2e-4), (out_f32, ref)

    # 2) bf16 MXU inputs (v6e/v7x fast path), f32 accumulation + f32 VPU math.
    fwd_bf16 = jax.jit(partial(cnn_silence_decoder_simple, use_bf16=True))
    out_bf16 = jax.block_until_ready(fwd_bf16(x, w_conv, b_conv, w_fc, b_fc))
    assert out_bf16.shape == (B, 1)
    assert jnp.allclose(out_bf16, ref, rtol=1e-2, atol=1e-2), (out_bf16, ref)

    # 3) single-tile path (whole batch in one grid step).
    fwd_one = jax.jit(partial(cnn_silence_decoder_simple,
                              batch_tile=16, use_bf16=True))
    out_one = jax.block_until_ready(fwd_one(x, w_conv, b_conv, w_fc, b_fc))
    assert out_one.shape == (B, 1)
    assert jnp.allclose(out_one, ref, rtol=1e-2, atol=1e-2), (out_one, ref)

    print("KERNEL_OK")
</pallas_src>

<mosaic_0001>
module attributes {stable_mosaic.version = 11 : i64} {
  func.func @_decoder_kernel(%arg0: i32, %arg1: memref<8x160xf32, #tpu.memory_space<vmem>>, %arg2: memref<160x320xf32, #tpu.memory_space<vmem>>, %arg3: memref<1x320xf32, #tpu.memory_space<vmem>>, %arg4: memref<1x320xf32, #tpu.memory_space<vmem>>, %arg5: memref<1xf32, #tpu.memory_space<smem>>, %arg6: memref<8x1xf32, #tpu.memory_space<vmem>>) attributes {dimension_semantics = [#tpu.dimension_semantics<parallel>], iteration_bounds = array<i64: 2>, scalar_prefetch = 0 : i64, scratch_operands = 0 : i64, tpu.core_type = #tpu.core_type<tc>, window_params = [{transform_indices = @transform_0, window_bounds = array<i64: 8, 160>}, {pipeline_mode = #tpu.pipeline_mode<synchronous>, transform_indices = @transform_1, window_bounds = array<i64: 160, 320>}, {pipeline_mode = #tpu.pipeline_mode<synchronous>, transform_indices = @transform_2, window_bounds = array<i64: 1, 320>}, {pipeline_mode = #tpu.pipeline_mode<synchronous>, transform_indices = @transform_3, window_bounds = array<i64: 1, 320>}, {transform_indices = @transform_4, window_bounds = array<i64: 1>}, {transform_indices = @transform_5, window_bounds = array<i64: 8, 1>}]} {
    %c0 = arith.constant 0 : index
    %c0_0 = arith.constant 0 : index
    %0 = vector.load %arg1[%c0, %c0_0] : memref<8x160xf32, #tpu.memory_space<vmem>>, vector<8x160xf32>
    %c0_1 = arith.constant 0 : index
    %c0_2 = arith.constant 0 : index
    %1 = vector.load %arg2[%c0_1, %c0_2] : memref<160x320xf32, #tpu.memory_space<vmem>>, vector<160x320xf32>
    %cst = arith.constant dense<0.000000e+00> : vector<8x320xf32>
    %2 = tpu.matmul %0, %1, %cst {dimension_numbers = #tpu.dot_dimension_numbers<[1], [0], [0], [1], [0, 0, 1, 1], [], []>} : vector<8x160xf32>, vector<160x320xf32>, vector<8x320xf32> -> vector<8x320xf32>
    %c0_3 = arith.constant 0 : index
    %c0_4 = arith.constant 0 : index
    %3 = vector.load %arg3[%c0_3, %c0_4] : memref<1x320xf32, #tpu.memory_space<vmem>>, vector<1x320xf32>
    %4 = vector.broadcast %3 : vector<1x320xf32> to vector<8x320xf32>
    %5 = arith.addf %2, %4 : vector<8x320xf32>
    %cst_5 = arith.constant 0.000000e+00 : f32
    %6 = vector.broadcast %cst_5 : f32 to vector<8x320xf32>
    %7 = arith.maximumf %5, %6 : vector<8x320xf32>
    %c0_6 = arith.constant 0 : index
    %c0_7 = arith.constant 0 : index
    %8 = vector.load %arg4[%c0_6, %c0_7] : memref<1x320xf32, #tpu.memory_space<vmem>>, vector<1x320xf32>
    %9 = vector.broadcast %8 : vector<1x320xf32> to vector<8x320xf32>
    %10 = arith.mulf %7, %9 : vector<8x320xf32>
    %cst_8 = arith.constant dense<0.000000e+00> : vector<8xf32>
    %11 = vector.multi_reduction <add>, %10, %cst_8 [1] : vector<8x320xf32> to vector<8xf32>
    %12 = vector.shape_cast %11 : vector<8xf32> to vector<8x1xf32>
    %c0_9 = arith.constant 0 : index
    %13 = memref.load %arg5[%c0_9] : memref<1xf32, #tpu.memory_space<smem>>
    %14 = vector.broadcast %13 : f32 to vector<8x1xf32>
    %15 = arith.addf %12, %14 : vector<8x1xf32>
    %16 = arith.negf %15 : vector<8x1xf32>
    %17 = math.exp %16 : vector<8x1xf32>
    %cst_10 = arith.constant 1.000000e+00 : f32
    %18 = vector.broadcast %cst_10 : f32 to vector<8x1xf32>
    %19 = arith.addf %18, %17 : vector<8x1xf32>
    %20 = arith.divf %18, %19 : vector<8x1xf32>
    %c0_11 = arith.constant 0 : index
    %c0_12 = arith.constant 0 : index
    %21 = vector.load %arg6[%c0_11, %c0_12] : memref<8x1xf32, #tpu.memory_space<vmem>>, vector<8x1xf32>
    tpu.vector_store %arg6[%c0_11, %c0_12], %20 {strides = array<i32>} : memref<8x1xf32, #tpu.memory_space<vmem>>, vector<8x1xf32>,
    return
  }
  func.func @transform_0(%arg0: i32) -> (i32, i32) {
    %c0_i32 = arith.constant 0 : i32
    %c0_i32_0 = arith.constant 0 : i32
    return %arg0, %c0_i32 : i32, i32
  }
  func.func @transform_1(%arg0: i32) -> (i32, i32) {
    %c0_i32 = arith.constant 0 : i32
    %c0_i32_0 = arith.constant 0 : i32
    %c0_i32_1 = arith.constant 0 : i32
    return %c0_i32, %c0_i32_0 : i32, i32
  }
  func.func @transform_2(%arg0: i32) -> (i32, i32) {
    %c0_i32 = arith.constant 0 : i32
    %c0_i32_0 = arith.constant 0 : i32
    %c0_i32_1 = arith.constant 0 : i32
    return %c0_i32, %c0_i32_0 : i32, i32
  }
  func.func @transform_3(%arg0: i32) -> (i32, i32) {
    %c0_i32 = arith.constant 0 : i32
    %c0_i32_0 = arith.constant 0 : i32
    %c0_i32_1 = arith.constant 0 : i32
    return %c0_i32, %c0_i32_0 : i32, i32
  }
  func.func @transform_4(%arg0: i32) -> i32 {
    %c0_i32 = arith.constant 0 : i32
    %c0_i32_0 = arith.constant 0 : i32
    return %c0_i32 : i32
  }
  func.func @transform_5(%arg0: i32) -> (i32, i32) {
    %c0_i32 = arith.constant 0 : i32
    %c0_i32_0 = arith.constant 0 : i32
    return %arg0, %c0_i32 : i32, i32
  }
}

</mosaic_0001>

<llo_original>
// kernel: tile.8
$region0: #{tile.8}
  #allocation0 [shape = 's32[1]{0}', space=sflag, size = 0x4, scoped, tag = 'scoped memory for tile.8']
  %s0 = inlined_call_operand.vmem [shape: f32[64], index: 0, kind: input, shape index: {}]
  %s1 = inlined_call_operand.vmem [shape: f32[5,64], index: 1, kind: output, shape index: {}]
  // Predicated region
  $region2: #{tile.8} parent=0 // pred_check
    _
  $region3: #{tile.8} parent=0 // pred_check_branch
    %3 = sbr.rel (0) target = $region5
  $region4: #{tile.8} parent=0 // pred_region
    _
  $region5: #{tile.8} parent=0 // pred_fallthru
    _
  %v4 = vld [vmem:[%s0] ss:$0 sm:$0xff]
  %5 = vst [vmem:[%s1] sm:$0xff] %v4

// kernel: cnn_silence_decoder_simple.1
$region0: #{cnn_silence_decoder_simple.1}
  #allocation0 [shape = 'u32[]', space=smem, size = 0x4, offset = 0x4, fixed_abs, tag = 'smem constant byte address 0x4 - core index']
  #allocation1 [shape = 'u32[144,128]{1,0:T(1,128)}', space=vmem, size = 0x12000, scoped, tag = 'internal scratch']
  #allocation2 [shape = 'f32[1]{0:T(128)S(6)}', space=smem, size = 0x200, scoped, tag = 'scoped memory for cnn_silence_decoder_simple.1']
  %s0 = inlined_call_operand.vmem [shape: f32[16,160], index: 0, kind: input, shape index: {}]
  %s1 = inlined_call_operand.vmem [shape: f32[160,320], index: 1, kind: input, shape index: {}]
  %s2 = inlined_call_operand.vmem [shape: f32[1,320], index: 2, kind: input, shape index: {}]
  %s3 = inlined_call_operand.vmem [shape: f32[1,320], index: 3, kind: input, shape index: {}]
  %s4 = inlined_call_operand.<no memory space> [shape: f32[1], index: 4, kind: input, shape index: {}]
  %s5 = inlined_call_operand.vmem [shape: f32[16,1], index: 5, kind: output, shape index: {}]
  %s6 = sld [smem:[#allocation0]]
  $region53: #{cnn_silence_decoder_simple.1} parent=0
    _
  %s8 = ssub.s32 1, %s6
  %s9 = scalar_select 0, %s8, %s6
  %10 = sst [smem:[#allocation2]] %s4
  loop: start=0, step=1, limit=4
  $region2: #{cnn_silence_decoder_simple.1} parent=0 // loop_pre_header
    _
  $region3: #{cnn_silence_decoder_simple.1} parent=0 // loop_header
    %s12 = sphi 0, %s16
    %p13 = scmp.ge.s32.totalorder %s12, 4
    %s22 = sphi 0, %s24
    %s25 = sphi 0, %s22
    %s26 = sphi 0, %s25
    %s42 = sphi 0, %s26
    %s46 = sphi 0, %s46
    %s48 = sphi 0, %s46
    %s49 = sphi 0, %s48
    %s63 = sphi 0, %s49
    %s67 = sphi 0, %s67
    %s69 = sphi 0, %s67
    %s70 = sphi 0, %s69
    %s84 = sphi 0, %s70
    %s88 = sphi 0, %s88
    %s90 = sphi 0, %s88
    %s91 = sphi 0, %s90
    %s105 = sphi 0, %s91
    %s109 = sphi 0, %s109
    %s111 = sphi 0, %s109
    %s112 = sphi 0, %s111
    %s126 = sphi 0, %s112
    %s132 = sphi 0, %s134
    %s135 = sphi 0, %s132
    %s136 = sphi 0, %s135
    %s152 = sphi 0, %s136
  $region4: #{cnn_silence_decoder_simple.1} parent=0 // loop_header_branch
    %15 = sbr.rel (%p13) target = $region8
  $region5: #{cnn_silence_decoder_simple.1} parent=0 // loop_body
    %s17 = ssub.s32 %s12, 1
    %s18 = ssub.s32 %s12, 2
    %s19 = sadd.s32 %s12, 1
    %s20 = ssub.s32 %s12, %s19
    %p21 = scmp.eq.s32.totalorder %s20, 0
    %s23 = sadd.s32 %s22, 1
    %s24 = scalar_select %p21, %s22, %s23
    %p27 = pneg %p21
    %p28 = scmp.eq.s32.totalorder %s12, 1
    %p29 = por %p27, %p28
    %p30 = scmp.ne.s32.totalorder %s22, %s25
    %p31 = scmp.eq.s32.totalorder %s12, 0
    %p32 = por %p30, %p31
    %p33 = scmp.ne.s32.totalorder %s22, %s25
    %p34 = scmp.eq.s32.totalorder %s17, 1
    %p35 = por %p33, %p34
    %p36 = scmp.ne.s32.totalorder %s25, %s26
    %p37 = scmp.eq.s32.totalorder %s17, 0
    %p38 = por %p36, %p37
    %p39 = scmp.ne.s32.totalorder %s25, %s26
    %p40 = scmp.eq.s32.totalorder %s18, 1
    %p41 = por %p39, %p40
    %p43 = scmp.ne.s32.totalorder %s26, %s42
    %p44 = scmp.eq.s32.totalorder %s18, 0
    %p45 = por %p43, %p44
    %s47 = sadd.s32 %s46, 1
    %p50 = scmp.eq.s32.totalorder %s12, 1
    %p51 = scmp.ne.s32.totalorder %s46, %s48
    %p52 = scmp.eq.s32.totalorder %s12, 0
    %p53 = por %p51, %p52
    %p54 = scmp.ne.s32.totalorder %s46, %s48
    %p55 = scmp.eq.s32.totalorder %s17, 1
    %p56 = por %p54, %p55
    %p57 = scmp.ne.s32.totalorder %s48, %s49
    %p58 = scmp.eq.s32.totalorder %s17, 0
    %p59 = por %p57, %p58
    %p60 = scmp.ne.s32.totalorder %s48, %s49
    %p61 = scmp.eq.s32.totalorder %s18, 1
    %p62 = por %p60, %p61
    %p64 = scmp.ne.s32.totalorder %s49, %s63
    %p65 = scmp.eq.s32.totalorder %s18, 0
    %p66 = por %p64, %p65
    %s68 = sadd.s32 %s67, 1
    %p71 = scmp.eq.s32.totalorder %s12, 1
    %p72 = scmp.ne.s32.totalorder %s67, %s69
    %p73 = scmp.eq.s32.totalorder %s12, 0
    %p74 = por %p72, %p73
    %p75 = scmp.ne.s32.totalorder %s67, %s69
    %p76 = scmp.eq.s32.totalorder %s17, 1
    %p77 = por %p75, %p76
    %p78 = scmp.ne.s32.totalorder %s69, %s70
    %p79 = scmp.eq.s32.totalorder %s17, 0
    %p80 = por %p78, %p79
    %p81 = scmp.ne.s32.totalorder %s69, %s70
    %p82 = scmp.eq.s32.totalorder %s18, 1
    %p83 = por %p81, %p82
    %p85 = scmp.ne.s32.totalorder %s70, %s84
    %p86 = scmp.eq.s32.totalorder %s18, 0
    %p87 = por %p85, %p86
    %s89 = sadd.s32 %s88, 1
    %p92 = scmp.eq.s32.totalorder %s12, 1
    %p93 = scmp.ne.s32.totalorder %s88, %s90
    %p94 = scmp.eq.s32.totalorder %s12, 0
    %p95 = por %p93, %p94
    %p96 = scmp.ne.s32.totalorder %s88, %s90
    %p97 = scmp.eq.s32.totalorder %s17, 1
    %p98 = por %p96, %p97
    %p99 = scmp.ne.s32.totalorder %s90, %s91
    %p100 = scmp.eq.s32.totalorder %s17, 0
    %p101 = por %p99, %p100
    %p102 = scmp.ne.s32.totalorder %s90, %s91
    %p103 = scmp.eq.s32.totalorder %s18, 1
    %p104 = por %p102, %p103
    %p106 = scmp.ne.s32.totalorder %s91, %s105
    %p107 = scmp.eq.s32.totalorder %s18, 0
    %p108 = por %p106, %p107
    %s110 = sadd.s32 %s109, 1
    %p113 = scmp.eq.s32.totalorder %s12, 1
    %p114 = scmp.ne.s32.totalorder %s109, %s111
    %p115 = scmp.eq.s32.totalorder %s12, 0
    %p116 = por %p114, %p115
    %p117 = scmp.ne.s32.totalorder %s109, %s111
    %p118 = scmp.eq.s32.totalorder %s17, 1
    %p119 = por %p117, %p118
    %p120 = scmp.ne.s32.totalorder %s111, %s112
    %p121 = scmp.eq.s32.totalorder %s17, 0
    %p122 = por %p120, %p121
    %p123 = scmp.ne.s32.totalorder %s111, %s112
    %p124 = scmp.eq.s32.totalorder %s18, 1
    %p125 = por %p123, %p124
    %p127 = scmp.ne.s32.totalorder %s112, %s126
    %p128 = scmp.eq.s32.totalorder %s18, 0
    %p129 = por %p127, %p128
    %s130 = ssub.s32 %s12, %s19
    %p131 = scmp.eq.s32.totalorder %s130, 0
    %s133 = sadd.s32 %s132, 1
    %s134 = scalar_select %p131, %s132, %s133
    %p137 = pneg %p131
    %p138 = scmp.eq.s32.totalorder %s12, 1
    %p139 = por %p137, %p138
    %p140 = scmp.ne.s32.totalorder %s132, %s135
    %p141 = scmp.eq.s32.totalorder %s12, 0
    %p142 = por %p140, %p141
    %p143 = scmp.ne.s32.totalorder %s132, %s135
    %p144 = scmp.eq.s32.totalorder %s17, 1
    %p145 = por %p143, %p144
    %p146 = scmp.ne.s32.totalorder %s135, %s136
    %p147 = scmp.eq.s32.totalorder %s17, 0
    %p148 = por %p146, %p147
    %p149 = scmp.ne.s32.totalorder %s135, %s136
    %p150 = scmp.eq.s32.totalorder %s18, 1
    %p151 = por %p149, %p150
    %p153 = scmp.ne.s32.totalorder %s136, %s152
    %p154 = scmp.eq.s32.totalorder %s18, 0
    %p155 = por %p153, %p154
    %p156 = scmp.le.s32.totalorder 1, %s12
    %p157 = scmp.lt.s32.totalorder %s12, 3
    %p158 = pnand %p156, %p157
    %p159 = pneg %p158
    // Predicated region
    $region9: #{cnn_silence_decoder_simple.1} parent=5 // pred_check
      _
    $region10: #{cnn_silence_decoder_simple.1} parent=5 // pred_check_branch
      %161 = sbr.rel (%p158) target = $region12
    $region11: #{cnn_silence_decoder_simple.1} parent=5 // pred_region
      %s162 = ssub.s32 %s12, 1
      // Predicated region
      $region13: #{cnn_silence_decoder_simple.1} parent=11 // pred_check
        %p163 = pneg %p59
      $region14: #{cnn_silence_decoder_simple.1} parent=11 // pred_check_branch
        %165 = sbr.rel (%p163) target = $region16
      $region15: #{cnn_silence_decoder_simple.1} parent=11 // pred_region
        _
      $region16: #{cnn_silence_decoder_simple.1} parent=11 // pred_fallthru
        _
      // Predicated region
      $region17: #{cnn_silence_decoder_simple.1} parent=11 // pred_check
        %p166 = pneg %p80
      $region18: #{cnn_silence_decoder_simple.1} parent=11 // pred_check_branch
        %168 = sbr.rel (%p166) target = $region20
      $region19: #{cnn_silence_decoder_simple.1} parent=11 // pred_region
        _
      $region20: #{cnn_silence_decoder_simple.1} parent=11 // pred_fallthru
        _
      // Predicated region
      $region21: #{cnn_silence_decoder_simple.1} parent=11 // pred_check
        %p169 = pneg %p101
      $region22: #{cnn_silence_decoder_simple.1} parent=11 // pred_check_branch
        %171 = sbr.rel (%p169) target = $region24
      $region23: #{cnn_silence_decoder_simple.1} parent=11 // pred_region
        _
      $region24: #{cnn_silence_decoder_simple.1} parent=11 // pred_fallthru
        _
      // Predicated region
      $region25: #{cnn_silence_decoder_simple.1} parent=11 // pred_check
        %p172 = pneg %p122
      $region26: #{cnn_silence_decoder_simple.1} parent=11 // pred_check_branch
        %174 = sbr.rel (%p172) target = $region28
      $region27: #{cnn_silence_decoder_simple.1} parent=11 // pred_region
        _
      $region28: #{cnn_silence_decoder_simple.1} parent=11 // pred_fallthru
        _
    $region12: #{cnn_silence_decoder_simple.1} parent=5 // pred_fallthru
      _
    %p175 = scmp.lt.s32.totalorder %s12, 2
    // Predicated region
    $region29: #{cnn_silence_decoder_simple.1} parent=5 // pred_check
      %p176 = pneg %p175
    $region30: #{cnn_silence_decoder_simple.1} parent=5 // pred_check_branch
      %178 = sbr.rel (%p176) target = $region32
    $region31: #{cnn_silence_decoder_simple.1} parent=5 // pred_region
      // Predicated region
      $region33: #{cnn_silence_decoder_simple.1} parent=31 // pred_check
        %p179 = pneg %p32
      $region34: #{cnn_silence_decoder_simple.1} parent=31 // pred_check_branch
        %181 = sbr.rel (%p179) target = $region36
      $region35: #{cnn_silence_decoder_simple.1} parent=31 // pred_region
        %p182 = scmp.lt.s32.totalorder %s12, 1
        %s183 = scalar_select %p182, %s12, 1
        %s184 = smul.addr %s183, 2
        %s185 = smul.addr %s184, 8
        %s186 = scalar_lea.vmem %s0, %s185
      $region36: #{cnn_silence_decoder_simple.1} parent=31 // pred_fallthru
        _
    $region32: #{cnn_silence_decoder_simple.1} parent=5 // pred_fallthru
      _
    %p187 = scmp.le.s32.totalorder 1, %s12
    %p188 = scmp.lt.s32.totalorder %s12, 3
    %p189 = pnand %p187, %p188
    %p190 = pneg %p189
    // Predicated region
    $region37: #{cnn_silence_decoder_simple.1} parent=5 // pred_check
      _
    $region38: #{cnn_silence_decoder_simple.1} parent=5 // pred_check_branch
      %192 = sbr.rel (%p189) target = $region40
    $region39: #{cnn_silence_decoder_simple.1} parent=5 // pred_region
      %s193 = ssub.s32 %s12, 1
      %p194 = scmp.lt.s32.totalorder %s17, 1
      %s195 = scalar_select %p194, %s17, 1
      %s196 = smul.addr %s195, 2
      %s197 = smul.addr %s196, 8
      %s198 = scalar_lea.vmem %s0, %s197
      %p199 = pneg %p38
      %p200 = pneg %p35
      %p201 = pneg %p59
      %p202 = pneg %p56
      %p203 = pneg %p80
      %p204 = pneg %p77
      %p205 = pneg %p101
      %p206 = pneg %p98
      %p207 = pneg %p122
      %p208 = pneg %p119
      %p209 = pneg %p148
      %p210 = pneg %p145
      %p211 = scmp.lt.s32.totalorder %s17, 1
      %s212 = scalar_select %p211, %s17, 1
      %s213 = smul.addr %s212, 8
      %s214 = scalar_lea.vmem %s5, %s213
      %p215 = scmp.lt.s32.totalorder %s17, 1
      %s216 = scalar_select %p215, %s17, 1
      %s217 = smul.addr %s216, 2
      %s218 = smul.addr %s217, 8
      %s219 = scalar_lea.vmem %s0, %s218
      %p220 = scmp.lt.s32.totalorder %s17, 1
      %s221 = scalar_select %p220, %s17, 1
      %s222 = smul.addr %s221, 8
      %s223 = scalar_lea.vmem %s5, %s222
      %v224 = vld [vmem:[%s219] sm:$0xff]
      %v225 = vld [vmem:[%s219 + $0x8] sm:$0xff]
      %v226 = vld [vmem:[%s1] sm:$0xff]
      %v227 = vld [vmem:[%s1 + $0x8] sm:$0xff]
      %v228 = vld [vmem:[%s1 + $0x10] sm:$0xff]
      %v229 = vld [vmem:[%s1 + $0x18] sm:$0xff]
      %v230 = vld [vmem:[%s1 + $0x20] sm:$0xff]
      %v231 = vld [vmem:[%s1 + $0x28] sm:$0xff]
      %v232 = vld [vmem:[%s1 + $0x30] sm:$0xff]
      %v233 = vld [vmem:[%s1 + $0x38] sm:$0xff]
      %v234 = vld [vmem:[%s1 + $0x40] sm:$0xff]
      %v235 = vld [vmem:[%s1 + $0x48] sm:$0xff]
      %v236 = vld [vmem:[%s1 + $0x50] sm:$0xff]
      %v237 = vld [vmem:[%s1 + $0x58] sm:$0xff]
      %v238 = vld [vmem:[%s1 + $0x60] sm:$0xff]
      %v239 = vld [vmem:[%s1 + $0x68] sm:$0xff]
      %v240 = vld [vmem:[%s1 + $0x70] sm:$0xff]
      %v241 = vld [vmem:[%s1 + $0x78] sm:$0xff]
      %v242 = vld [vmem:[%s1 + $0x80] sm:$0xff]
      %v243 = vld [vmem:[%s1 + $0x88] sm:$0xff]
      %v244 = vld [vmem:[%s1 + $0x90] sm:$0xff]
      %v245 = vld [vmem:[%s1 + $0x98] sm:$0xff]
      %v246 = vld [vmem:[%s1 + $0xa0] sm:$0xff]
      %v247 = vld [vmem:[%s1 + $0xa8] sm:$0xff]
      %v248 = vld [vmem:[%s1 + $0xb0] sm:$0xff]
      %v249 = vld [vmem:[%s1 + $0xb8] sm:$0xff]
      %v250 = vld [vmem:[%s1 + $0xc0] sm:$0xff]
      %v251 = vld [vmem:[%s1 + $0xc8] sm:$0xff]
      %v252 = vld [vmem:[%s1 + $0xd0] sm:$0xff]
      %v253 = vld [vmem:[%s1 + $0xd8] sm:$0xff]
      %v254 = vld [vmem:[%s1 + $0xe0] sm:$0xff]
      %v255 = vld [vmem:[%s1 + $0xe8] sm:$0xff]
      %v256 = vld [vmem:[%s1 + $0xf0] sm:$0xff]
      %v257 = vld [vmem:[%s1 + $0xf8] sm:$0xff]
      %v258 = vld [vmem:[%s1 + $0x100] sm:$0xff]
      %v259 = vld [vmem:[%s1 + $0x108] sm:$0xff]
      %v260 = vld [vmem:[%s1 + $0x110] sm:$0xff]
      %v261 = vld [vmem:[%s1 + $0x118] sm:$0xff]
      %v262 = vld [vmem:[%s1 + $0x120] sm:$0xff]
      %v263 = vld [vmem:[%s1 + $0x128] sm:$0xff]
      %v264 = vld [vmem:[%s1 + $0x130] sm:$0xff]
      %v265 = vld [vmem:[%s1 + $0x138] sm:$0xff]
      %v266 = vld [vmem:[%s1 + $0x140] sm:$0xff]
      %v267 = vld [vmem:[%s1 + $0x148] sm:$0xff]
      %v268 = vld [vmem:[%s1 + $0x150] sm:$0xff]
      %v269 = vld [vmem:[%s1 + $0x158] sm:$0xff]
      %v270 = vld [vmem:[%s1 + $0x160] sm:$0xff]
      %v271 = vld [vmem:[%s1 + $0x168] sm:$0xff]
      %v272 = vld [vmem:[%s1 + $0x170] sm:$0xff]
      %v273 = vld [vmem:[%s1 + $0x178] sm:$0xff]
      %v274 = vld [vmem:[%s1 + $0x180] sm:$0xff]
      %v275 = vld [vmem:[%s1 + $0x188] sm:$0xff]
      %v276 = vld [vmem:[%s1 + $0x190] sm:$0xff]
      %v277 = vld [vmem:[%s1 + $0x198] sm:$0xff]
      %v278 = vld [vmem:[%s1 + $0x1a0] sm:$0xff]
      %v279 = vld [vmem:[%s1 + $0x1a8] sm:$0xff]
      %v280 = vld [vmem:[%s1 + $0x1b0] sm:$0xff]
      %v281 = vld [vmem:[%s1 + $0x1b8] sm:$0xff]
      %v282 = vld [vmem:[%s1 + $0x1c0] sm:$0xff]
      %v283 = vld [vmem:[%s1 + $0x1c8] sm:$0xff]
      %v284 = vld [vmem:[%s1 + $0x1d0] sm:$0xff]
      %v285 = vld [vmem:[%s1 + $0x1d8] sm:$0xff]
      %v286 = vld [vmem:[%s2] sm:$0x7]
      %v288 = vlaneseq
      %v289 = vshrl.u32 %v288, 7
      %v290 = vsub.s32 0, %v289
      %v291 = vrot.slane %v286, %v290
      %v292 = vlaneseq
      %v293 = vshrl.u32 %v292, 7
      %v294 = vsub.s32 1, %v293
      %v295 = vrot.slane %v286, %v294
      %v296 = vlaneseq
      %v297 = vshrl.u32 %v296, 7
      %v298 = vsub.s32 2, %v297
      %v299 = vrot.slane %v286, %v298
      %vm303 = vcmask 261120
      %v305 = vsel %vm303, %v225, 0
      %307 = vmatprep.subr.mxu0 %v272
      %308 = vmatpush1.msra.mxu0 %v271
      %309 = vmatprep.subr.mxu0 %v269
      %310 = vmatpush1.msra.mxu0 %v268
      %311 = vmatprep.subr.mxu0 %v266
      %312 = vmatpush1.msra.mxu0 %v265
      %313 = vmatprep.subr.mxu0 %v263
      %314 = vmatpush1.msra.mxu0 %v262
      %315 = vmatprep.subr.mxu0 %v260
      %316 = vmatpush1.msra.mxu0 %v259
      %317 = vmatprep.subr.mxu0 %v257
      %318 = vmatpush1.msra.mxu0 %v256
      %319 = vmatprep.subr.mxu0 %v254
      %320 = vmatpush1.msra.mxu0 %v253
      %321 = vmatprep.subr.mxu0 %v251
      %322 = vmatpush1.msra.mxu0 %v250
      %323 = vmatprep.subr.mxu0 %v248
      %324 = vmatpush1.msra.mxu0 %v247
      %325 = vmatprep.subr.mxu0 %v245
      %326 = vmatpush1.msra.mxu0 %v244
      %327 = vmatprep.subr.mxu0 %v242
      %328 = vmatpush1.msra.mxu0 %v241
      %329 = vmatprep.subr.mxu0 %v239
      %330 = vmatpush1.msra.mxu0 %v238
      %331 = vmatprep.subr.mxu0 %v236
      %332 = vmatpush1.msra.mxu0 %v235
      %333 = vmatprep.subr.mxu0 %v233
      %334 = vmatpush1.msra.mxu0 %v232
      %335 = vmatprep.subr.mxu0 %v230
      %336 = vmatpush1.msra.mxu0 %v229
      %337 = vmatprep.subr.mxu0 %v227
      %338 = vmatpush1.msra.mxu0 %v226
      %339 = vmatprep.subr.mxu0 0.0
      %340 = vmatpush2.msra.mxu0 0.0
      %341 = vmatprep.subr.mxu0 0.0
      %342 = vmatpush2.msra.mxu0 0.0
      %343 = vmatprep.subr.mxu0 0.0
      %344 = vmatpush2.msra.mxu0 0.0
      %345 = vmatprep.subr.mxu0 0.0
      %346 = vmatpush2.msra.mxu0 0.0
      %347 = vmatprep.subr.mxu0 0.0
      %348 = vmatpush2.msra.mxu0 0.0
      %349 = vmatprep.subr.mxu0 0.0
      %350 = vmatpush2.msra.mxu0 0.0
      %351 = vmatprep.subr.mxu0 0.0
      %352 = vmatpush2.msra.mxu0 0.0
      %353 = vmatprep.subr.mxu0 0.0
      %354 = vmatpush2.msra.mxu0 0.0
      %355 = vmatprep.subr.mxu0 0.0
      %356 = vmatpush2.msra.mxu0 0.0
      %357 = vmatprep.subr.mxu0 0.0
      %358 = vmatpush2.msra.mxu0 0.0
      %359 = vmatprep.subr.mxu0 0.0
      %360 = vmatpush2.msra.mxu0 0.0
      %361 = vmatprep.subr.mxu0 0.0
      %362 = vmatpush2.msra.mxu0 0.0
      %363 = vmatprep.subr.mxu0 %v284
      %364 = vmatpush2.msra.mxu0 %v283
      %365 = vmatprep.subr.mxu0 %v281
      %366 = vmatpush2.msra.mxu0 %v280
      %367 = vmatprep.subr.mxu0 %v278
      %368 = vmatpush2.msra.mxu0 %v277
      %369 = vmatprep.subr.mxu0 %v275
      %370 = vmatpush2.msra.mxu0 %v274
      %371 = vmatprep.mubr.f32.mxu0 %v305
      %372 = vmatmul.mubr.f32.gmra.mxu0 %v224
      %v373 = vpop.f32.mrf.mxu0
      %v374 = vadd.f32 %v291, %v373
      %v375 = vpop.f32.mrf.mxu0
      %v376 = vadd.f32 %v295, %v375
      %377 = vdwg.mxu0
      %378 = vmatprep.subr.mxu0 0.0
      %379 = vmatpush1.msra.mxu0 %v273
      %380 = vmatprep.subr.mxu0 0.0
      %381 = vmatpush1.msra.mxu0 %v270
      %382 = vmatprep.subr.mxu0 0.0
      %383 = vmatpush1.msra.mxu0 %v267
      %384 = vmatprep.subr.mxu0 0.0
      %385 = vmatpush1.msra.mxu0 %v264
      %386 = vmatprep.subr.mxu0 0.0
      %387 = vmatpush1.msra.mxu0 %v261
      %388 = vmatprep.subr.mxu0 0.0
      %389 = vmatpush1.msra.mxu0 %v258
      %390 = vmatprep.subr.mxu0 0.0
      %391 = vmatpush1.msra.mxu0 %v255
      %392 = vmatprep.subr.mxu0 0.0
      %393 = vmatpush1.msra.mxu0 %v252
      %394 = vmatprep.subr.mxu0 0.0
      %395 = vmatpush1.msra.mxu0 %v249
      %396 = vmatprep.subr.mxu0 0.0
      %397 = vmatpush1.msra.mxu0 %v246
      %398 = vmatprep.subr.mxu0 0.0
      %399 = vmatpush1.msra.mxu0 %v243
      %400 = vmatprep.subr.mxu0 0.0
      %401 = vmatpush1.msra.mxu0 %v240
      %402 = vmatprep.subr.mxu0 0.0
      %403 = vmatpush1.msra.mxu0 %v237
      %404 = vmatprep.subr.mxu0 0.0
      %405 = vmatpush1.msra.mxu0 %v234
      %406 = vmatprep.subr.mxu0 0.0
      %407 = vmatpush1.msra.mxu0 %v231
      %408 = vmatprep.subr.mxu0 0.0
      %409 = vmatpush1.msra.mxu0 %v228
      %410 = vmatprep.subr.mxu0 0.0
      %411 = vmatpush2.msra.mxu0 0.0
      %412 = vmatprep.subr.mxu0 0.0
      %413 = vmatpush2.msra.mxu0 0.0
      %414 = vmatprep.subr.mxu0 0.0
      %415 = vmatpush2.msra.mxu0 0.0
      %416 = vmatprep.subr.mxu0 0.0
      %417 = vmatpush2.msra.mxu0 0.0
      %418 = vmatprep.subr.mxu0 0.0
      %419 = vmatpush2.msra.mxu0 0.0
      %420 = vmatprep.subr.mxu0 0.0
      %421 = vmatpush2.msra.mxu0 0.0
      %422 = vmatprep.subr.mxu0 0.0
      %423 = vmatpush2.msra.mxu0 0.0
      %424 = vmatprep.subr.mxu0 0.0
      %425 = vmatpush2.msra.mxu0 0.0
      %426 = vmatprep.subr.mxu0 0.0
      %427 = vmatpush2.msra.mxu0 0.0
      %428 = vmatprep.subr.mxu0 0.0
      %429 = vmatpush2.msra.mxu0 0.0
      %430 = vmatprep.subr.mxu0 0.0
      %431 = vmatpush2.msra.mxu0 0.0
      %432 = vmatprep.subr.mxu0 0.0
      %433 = vmatpush2.msra.mxu0 0.0
      %434 = vmatprep.subr.mxu0 0.0
      %435 = vmatpush2.msra.mxu0 %v285
      %436 = vmatprep.subr.mxu0 0.0
      %437 = vmatpush2.msra.mxu0 %v282
      %438 = vmatprep.subr.mxu0 0.0
      %439 = vmatpush2.msra.mxu0 %v279
      %440 = vmatprep.subr.mxu0 0.0
      %441 = vmatpush2.msra.mxu0 %v276
      %442 = vmatprep.mubr.f32.mxu0 %v305
      %443 = vmatmul.mubr.f32.gmra.mxu0 %v224
      %v444 = vpop.f32.mrf.mxu0
      %v445 = vadd.f32 %v299, %v444
      %v446 = vpop.f32.mrf.mxu0
      %447 = vdwg.mxu0
      %v448 = vmax.f32 %v374, 0.0
      %v449 = vmax.f32 %v376, 0.0
      %v450 = vmax.f32 %v445, 0.0
      %v451 = vld [vmem:[%s3] sm:$0x7]
      %v453 = vlaneseq
      %v454 = vshrl.u32 %v453, 7
      %v455 = vsub.s32 0, %v454
      %v456 = vrot.slane %v451, %v455
      %v457 = vlaneseq
      %v458 = vshrl.u32 %v457, 7
      %v459 = vsub.s32 1, %v458
      %v460 = vrot.slane %v451, %v459
      %v461 = vlaneseq
      %v462 = vshrl.u32 %v461, 7
      %v463 = vsub.s32 2, %v462
      %v464 = vrot.slane %v451, %v463
      %v468 = vmul.f32 %v448, %v456
      %v469 = vmul.f32 %v449, %v460
      %v470 = vmul.f32 %v450, %v464
      %v471 = vadd.f32 %v468, %v469
      %vm472 = vcmask 523264
      %v473 = vsel %vm472, %v470, 0.0
      %v474 = vadd.f32 %v471, %v473
      %475 = vadd.xlane.f32.xlu0 %v474
      %v476 = vpop.xlane.xlu0 %475
      %s477 = sld [smem:[#allocation2]]
      %v478 = vstv %s477
      %v479 = vadd.f32 %v476, %v478
      %v480 = vxor.u32 %v479, 2147483648
      %v481 = vmul.f32 %v480, 1.442695
      %v482 = vpow.pop %v481
      %v483 = vadd.f32 %v482, 1.0
      %v484 = vrcp.pop %v483
      %v485 = vmul.f32 1.0, %v484
      %vm486 = vcmask 7168
      %487 = vst.msk [vmem:[%s223] sm:$0xff] %vm486, %v485
      %p488 = scmp.lt.s32.totalorder %s17, 1
      %s489 = scalar_select %p488, %s17, 1
      %s490 = smul.addr %s489, 8
      %s491 = scalar_lea.vmem %s5, %s490
      // Predicated region
      $region41: #{cnn_silence_decoder_simple.1} parent=39 // pred_check
        %p492 = pneg %p145
      $region42: #{cnn_silence_decoder_simple.1} parent=39 // pred_check_branch
        %494 = sbr.rel (%p492) target = $region44
      $region43: #{cnn_silence_decoder_simple.1} parent=39 // pred_region
        _
      $region44: #{cnn_silence_decoder_simple.1} parent=39 // pred_fallthru
        _
    $region40: #{cnn_silence_decoder_simple.1} parent=5 // pred_fallthru
      _
    %p495 = scmp.le.s32.totalorder 2, %s12
    // Predicated region
    $region45: #{cnn_silence_decoder_simple.1} parent=5 // pred_check
      %p496 = pneg %p495
    $region46: #{cnn_silence_decoder_simple.1} parent=5 // pred_check_branch
      %498 = sbr.rel (%p496) target = $region48
    $region47: #{cnn_silence_decoder_simple.1} parent=5 // pred_region
      %s499 = ssub.s32 %s12, 2
      // Predicated region
      $region49: #{cnn_silence_decoder_simple.1} parent=47 // pred_check
        %p500 = pneg %p151
      $region50: #{cnn_silence_decoder_simple.1} parent=47 // pred_check_branch
        %502 = sbr.rel (%p500) target = $region52
      $region51: #{cnn_silence_decoder_simple.1} parent=47 // pred_region
        %p503 = scmp.lt.s32.totalorder %s18, 1
        %s504 = scalar_select %p503, %s18, 1
        %s505 = smul.addr %s504, 8
        %s506 = scalar_lea.vmem %s5, %s505
      $region52: #{cnn_silence_decoder_simple.1} parent=47 // pred_fallthru
        _
    $region48: #{cnn_silence_decoder_simple.1} parent=5 // pred_fallthru
      _
  $region6: #{cnn_silence_decoder_simple.1} parent=0 // loop_footer
    %s16 = sadd.s32 1, %s12
  $region7: #{cnn_silence_decoder_simple.1} parent=0 // loop_footer_branch
    %11 = sbr.rel target = $region3
  $region8: #{cnn_silence_decoder_simple.1} parent=0 // loop_exit
    _

</llo_original>
